<compile_context>
chip_gen: v7x
topology: tpu7x:2x2x1
jax: 0.10.0
libtpu: 0.0.40
codegen_flags: <defaults>
</compile_context>

<pallas_src>
import functools

import jax
import jax.numpy as jnp
from jax.experimental import pallas as pl
from jax.experimental.pallas import tpu as pltpu

_LANE = 128      # lane width: last block dim should be a multiple of this
_SUBLANE = 8     # sublanes: second-to-last block dim multiple (or full dim)


def _round_up(n, m):
    return ((n + m - 1) // m) * m


def _choose_tile_b(B, tile_b_max=512):
    """Batch tile: exact single block for small B; >=2 steps for larger B."""
    if B <= 256:
        return B                                   # one exact block, no padding
    steps = max(2, pl.cdiv(B, tile_b_max))         # >=2 steps (v7x dual-TC)
    tile = _round_up(pl.cdiv(B, steps), _SUBLANE)  # minimal edge-block waste
    tile_mxu = _round_up(tile, 256)                # MXU-friendly M when cheap
    if pl.cdiv(B, tile_mxu) == steps and tile_mxu * 4 <= tile * 5:
        tile = tile_mxu
    return tile


def _decoder_kernel(x_ref, w1_ref, b1_ref, w2_ref, b2_ref, o_ref):
    """One (tile_b, d_out_pad) tile of sigmoid(relu(x @ W1 + b1) @ W2 + b2)."""
    # MXU matmuls accumulate in f32; bias / ReLU / sigmoid stay f32 on VPU/EUP.
    x = x_ref[...].astype(w1_ref.dtype)
    h = jnp.dot(x, w1_ref[...], preferred_element_type=jnp.float32) + b1_ref[...]
    h = jnp.maximum(h, 0.0)

    logits = jnp.dot(h.astype(w2_ref.dtype), w2_ref[...],
                     preferred_element_type=jnp.float32) + b2_ref[...]

    # sigmoid = 1 / (1 + exp(-x)); approx reciprocal keeps only one exact
    # transcendental (the exp) per element on the single EUP slot.
    sig = pl.reciprocal(1.0 + jnp.exp(-logits), approx=True)
    o_ref[...] = sig.astype(o_ref.dtype)


def decoder_forward(x, params, d_out, *, tile_b_max=512, out_dtype=jnp.float32,
                    single_buffer_weights=False, trim_output=True):
    """Decoder.forward(x): x [B, d_in] -> [B, d_out] (or [B, d_out_pad])."""
    w1, b1, w2, b2 = params["w1"], params["b1"], params["w2"], params["b2"]
    B, d_in = x.shape
    assert w1.shape[0] == d_in, "W1 rows must equal d_in (no d_in padding)"
    h_pad = w1.shape[1]
    d_out_pad = w2.shape[1]
    assert d_out <= d_out_pad

    tile_b = _choose_tile_b(B, tile_b_max)
    grid = (pl.cdiv(B, tile_b),)

    # --- explicit VMEM budget (per review; default scoped limit is 16-32 MiB)
    w_isz = jnp.dtype(w1.dtype).itemsize
    x_isz = jnp.dtype(x.dtype).itemsize
    o_isz = jnp.dtype(out_dtype).itemsize
    n_wbuf = 1 if single_buffer_weights else 2
    vmem_needed = (
        2 * tile_b * d_in * x_isz                       # x tile, double buffered
        + 2 * tile_b * d_out_pad * o_isz                # out tile, double buffered
        + n_wbuf * ((d_in * h_pad + h_pad * d_out_pad) * w_isz
                    + (h_pad + d_out_pad) * 4)          # weights + f32 biases
        + tile_b * h_pad * (4 + w_isz)                  # f32 h + matmul-dtype copy
        + tile_b * d_out_pad * 4                        # f32 logits
    )
    vmem_limit = min(max(vmem_needed * 3 // 2 + (4 << 20), 32 << 20), 56 << 20)

    # Grid-invariant operands (constant index_map). Optionally single-buffered.
    wkw = dict(pipeline_mode=pl.Buffered(1)) if single_buffer_weights else {}
    in_specs = [
        pl.BlockSpec((tile_b, d_in), lambda i: (i, 0)),          # x: batch-tiled
        pl.BlockSpec((d_in, h_pad), lambda i: (0, 0), **wkw),    # W1
        pl.BlockSpec((1, h_pad), lambda i: (0, 0), **wkw),       # b1
        pl.BlockSpec((h_pad, d_out_pad), lambda i: (0, 0), **wkw),  # W2
        pl.BlockSpec((1, d_out_pad), lambda i: (0, 0), **wkw),   # b2
    ]

    flops = 2 * B * (d_in * h_pad + h_pad * d_out_pad)
    bytes_accessed = int(
        B * d_in * x_isz
        + sum(a.size * jnp.dtype(a.dtype).itemsize for a in (w1, b1, w2, b2))
        + B * d_out_pad * o_isz)
    cost = pl.CostEstimate(flops=flops, transcendentals=B * d_out_pad,
                           bytes_accessed=bytes_accessed)

    out = pl.pallas_call(
        _decoder_kernel,
        out_shape=jax.ShapeDtypeStruct((B, d_out_pad), out_dtype),
        grid=grid,
        in_specs=in_specs,
        out_specs=pl.BlockSpec((tile_b, d_out_pad), lambda i: (i, 0)),
        compiler_params=pltpu.CompilerParams(
            dimension_semantics=("parallel",),       # megacore-shard batch axis
            vmem_limit_bytes=int(vmem_limit)),
        cost_estimate=cost,
    )(x, w1, b1, w2, b2)

    if trim_output and d_out != d_out_pad:
        out = out[:, :d_out]          # lane-dim trim only; batch is never padded
    return out


def make_params(key, d_in, h, d_out, dtype=jnp.float32):
    """torch.nn.Linear-style init; lane-pad ONLY the output dims (h, d_out).

    Returns (kernel params, unpadded f32 reference params). Weight matmul
    operands may be bf16; biases stay f32 (added to the f32 accumulator).
    """
    h_pad, d_out_pad = _round_up(h, _LANE), _round_up(d_out, _LANE)

    def linear(k, fan_in, fan_out, pad_in, pad_out):
        kw, kb = jax.random.split(k)
        bound = 1.0 / float(fan_in) ** 0.5
        w = jax.random.uniform(kw, (fan_in, fan_out), jnp.float32, -bound, bound)
        b = jax.random.uniform(kb, (1, fan_out), jnp.float32, -bound, bound)
        w_p = jnp.zeros((pad_in, pad_out), jnp.float32).at[:fan_in, :fan_out].set(w)
        b_p = jnp.zeros((1, pad_out), jnp.float32).at[:, :fan_out].set(b)
        return w_p.astype(dtype), b_p, w, b

    k1, k2 = jax.random.split(key)
    w1_p, b1_p, w1, b1 = linear(k1, d_in, h, d_in, h_pad)        # d_in unpadded
    w2_p, b2_p, w2, b2 = linear(k2, h, d_out, h_pad, d_out_pad)
    return (dict(w1=w1_p, b1=b1_p, w2=w2_p, b2=b2_p),
            dict(w1=w1, b1=b1, w2=w2, b2=b2))


if __name__ == "__main__":
    # Small shapes consistent with Decoder(D_in, H, D_out).
    B, D_IN, H, D_OUT = 10, 16, 32, 64
    key = jax.random.PRNGKey(0)
    k_x, k_x2, k_p = jax.random.split(key, 3)
    x = jax.random.uniform(k_x, (B, D_IN), jnp.float32)

    params_f32, ref = make_params(k_p, D_IN, H, D_OUT, dtype=jnp.float32)

    def reference(xv):
        hh = jnp.maximum(xv @ ref["w1"] + ref["b1"], 0.0)
        return jax.nn.sigmoid(hh @ ref["w2"] + ref["b2"])

    # ----- f32 path (tolerance covers the approx-reciprocal sigmoid) -----
    fwd = jax.jit(functools.partial(decoder_forward, d_out=D_OUT))
    y = jax.block_until_ready(fwd(x, params_f32))
    y_ref = reference(x)
    assert y.shape == (B, D_OUT) and y.dtype == jnp.float32
    assert jnp.allclose(y, y_ref, atol=2e-2, rtol=2e-2)

    # ----- multi-step grid + partially-OOB edge block (no batch padding) -----
    B2 = 300
    x2 = jax.random.uniform(k_x2, (B2, D_IN), jnp.float32)
    y2 = jax.block_until_ready(fwd(x2, params_f32))
    assert y2.shape == (B2, D_OUT)
    assert jnp.allclose(y2, reference(x2), atol=2e-2, rtol=2e-2)

    # ----- bf16 weights + bf16 output (HBM-bound large-B path) -----
    # Loose tolerance is dominated by bf16 rounding of x / h before the MXU.
    params_bf16, _ = make_params(k_p, D_IN, H, D_OUT, dtype=jnp.bfloat16)
    y_bf16 = jax.block_until_ready(
        decoder_forward(x.astype(jnp.bfloat16), params_bf16, D_OUT,
                        out_dtype=jnp.bfloat16))
    assert y_bf16.dtype == jnp.bfloat16 and y_bf16.shape == (B, D_OUT)
    assert jnp.allclose(y_bf16.astype(jnp.float32), y_ref, atol=5e-2, rtol=5e-2)

    # ----- optional single-buffered weights (v7x 64 MiB VMEM relief) -----
    try:
        y_sb = jax.block_until_ready(
            decoder_forward(x, params_f32, D_OUT, single_buffer_weights=True))
        assert jnp.allclose(y_sb, y_ref, atol=2e-2, rtol=2e-2)
    except Exception:
        # TODO(synk): pipeline_mode=pl.Buffered(1) not supported on this jax
        # build; weights fall back to default double-buffering (correctness
        # unaffected, only v7x VMEM headroom).
        pass

    print("KERNEL_OK")
</pallas_src>

<mosaic_0001>
module attributes {stable_mosaic.version = 11 : i64} {
  func.func @_decoder_kernel(%arg0: i32, %arg1: memref<10x16xf32, #tpu.memory_space<vmem>>, %arg2: memref<16x128xf32, #tpu.memory_space<vmem>>, %arg3: memref<1x128xf32, #tpu.memory_space<vmem>>, %arg4: memref<128x128xf32, #tpu.memory_space<vmem>>, %arg5: memref<1x128xf32, #tpu.memory_space<vmem>>, %arg6: memref<10x128xf32, #tpu.memory_space<vmem>>) attributes {dimension_semantics = [#tpu.dimension_semantics<parallel>], iteration_bounds = array<i64: 1>, scalar_prefetch = 0 : i64, scratch_operands = 0 : i64, tpu.core_type = #tpu.core_type<tc>, window_params = [{transform_indices = @transform_0, window_bounds = array<i64: 10, 16>}, {pipeline_mode = #tpu.pipeline_mode<synchronous>, transform_indices = @transform_1, window_bounds = array<i64: 16, 128>}, {pipeline_mode = #tpu.pipeline_mode<synchronous>, transform_indices = @transform_2, window_bounds = array<i64: 1, 128>}, {pipeline_mode = #tpu.pipeline_mode<synchronous>, transform_indices = @transform_3, window_bounds = array<i64: 128, 128>}, {pipeline_mode = #tpu.pipeline_mode<synchronous>, transform_indices = @transform_4, window_bounds = array<i64: 1, 128>}, {transform_indices = @transform_5, window_bounds = array<i64: 10, 128>}]} {
    %c0 = arith.constant 0 : index
    %c0_0 = arith.constant 0 : index
    %0 = vector.load %arg1[%c0, %c0_0] : memref<10x16xf32, #tpu.memory_space<vmem>>, vector<10x16xf32>
    %c0_1 = arith.constant 0 : index
    %c0_2 = arith.constant 0 : index
    %1 = vector.load %arg2[%c0_1, %c0_2] : memref<16x128xf32, #tpu.memory_space<vmem>>, vector<16x128xf32>
    %cst = arith.constant dense<0.000000e+00> : vector<10x128xf32>
    %2 = tpu.matmul %0, %1, %cst {dimension_numbers = #tpu.dot_dimension_numbers<[1], [0], [0], [1], [0, 0, 1, 1], [], []>} : vector<10x16xf32>, vector<16x128xf32>, vector<10x128xf32> -> vector<10x128xf32>
    %c0_3 = arith.constant 0 : index
    %c0_4 = arith.constant 0 : index
    %3 = vector.load %arg3[%c0_3, %c0_4] : memref<1x128xf32, #tpu.memory_space<vmem>>, vector<1x128xf32>
    %4 = vector.broadcast %3 : vector<1x128xf32> to vector<10x128xf32>
    %5 = arith.addf %2, %4 : vector<10x128xf32>
    %cst_5 = arith.constant 0.000000e+00 : f32
    %6 = vector.broadcast %cst_5 : f32 to vector<10x128xf32>
    %7 = arith.maximumf %5, %6 : vector<10x128xf32>
    %c0_6 = arith.constant 0 : index
    %c0_7 = arith.constant 0 : index
    %8 = vector.load %arg4[%c0_6, %c0_7] : memref<128x128xf32, #tpu.memory_space<vmem>>, vector<128x128xf32>
    %cst_8 = arith.constant dense<0.000000e+00> : vector<10x128xf32>
    %9 = tpu.matmul %7, %8, %cst_8 {dimension_numbers = #tpu.dot_dimension_numbers<[1], [0], [0], [1], [0, 0, 1, 1], [], []>} : vector<10x128xf32>, vector<128x128xf32>, vector<10x128xf32> -> vector<10x128xf32>
    %c0_9 = arith.constant 0 : index
    %c0_10 = arith.constant 0 : index
    %10 = vector.load %arg5[%c0_9, %c0_10] : memref<1x128xf32, #tpu.memory_space<vmem>>, vector<1x128xf32>
    %11 = vector.broadcast %10 : vector<1x128xf32> to vector<10x128xf32>
    %12 = arith.addf %9, %11 : vector<10x128xf32>
    %cst_11 = arith.constant 0.000000e+00 : f32
    %13 = vector.broadcast %cst_11 : f32 to vector<10x128xf32>
    %14 = arith.subf %13, %12 : vector<10x128xf32>
    %15 = math.exp %14 : vector<10x128xf32>
    %cst_12 = arith.constant 1.000000e+00 : f32
    %16 = vector.broadcast %cst_12 : f32 to vector<10x128xf32>
    %17 = arith.addf %16, %15 : vector<10x128xf32>
    %18 = tpu.reciprocal %17 {approx = true} : vector<10x128xf32> -> vector<10x128xf32>
    %c0_13 = arith.constant 0 : index
    %c0_14 = arith.constant 0 : index
    %19 = vector.load %arg6[%c0_13, %c0_14] : memref<10x128xf32, #tpu.memory_space<vmem>>, vector<10x128xf32>
    tpu.vector_store %arg6[%c0_13, %c0_14], %18 {strides = array<i32>} : memref<10x128xf32, #tpu.memory_space<vmem>>, vector<10x128xf32>,
    return
  }
  func.func @transform_0(%arg0: i32) -> (i32, i32) {
    %c0_i32 = arith.constant 0 : i32
    %c0_i32_0 = arith.constant 0 : i32
    return %arg0, %c0_i32 : i32, i32
  }
  func.func @transform_1(%arg0: i32) -> (i32, i32) {
    %c0_i32 = arith.constant 0 : i32
    %c0_i32_0 = arith.constant 0 : i32
    %c0_i32_1 = arith.constant 0 : i32
    return %c0_i32, %c0_i32_0 : i32, i32
  }
  func.func @transform_2(%arg0: i32) -> (i32, i32) {
    %c0_i32 = arith.constant 0 : i32
    %c0_i32_0 = arith.constant 0 : i32
    %c0_i32_1 = arith.constant 0 : i32
    return %c0_i32, %c0_i32_0 : i32, i32
  }
  func.func @transform_3(%arg0: i32) -> (i32, i32) {
    %c0_i32 = arith.constant 0 : i32
    %c0_i32_0 = arith.constant 0 : i32
    %c0_i32_1 = arith.constant 0 : i32
    return %c0_i32, %c0_i32_0 : i32, i32
  }
  func.func @transform_4(%arg0: i32) -> (i32, i32) {
    %c0_i32 = arith.constant 0 : i32
    %c0_i32_0 = arith.constant 0 : i32
    %c0_i32_1 = arith.constant 0 : i32
    return %c0_i32, %c0_i32_0 : i32, i32
  }
  func.func @transform_5(%arg0: i32) -> (i32, i32) {
    %c0_i32 = arith.constant 0 : i32
    %c0_i32_0 = arith.constant 0 : i32
    return %arg0, %c0_i32 : i32, i32
  }
}

</mosaic_0001>

<llo_original>
// kernel: decoder_forward.1
$region0: #{decoder_forward.1}
  #allocation0 [shape = 'u32[]', space=smem, size = 0x4, offset = 0x4, fixed_abs, tag = 'smem constant byte address 0x4 - core index']
  #allocation1 [shape = 'u32[144,128]{1,0:T(1,128)}', space=vmem, size = 0x12000, scoped, tag = 'internal scratch']
  %s0 = inlined_call_operand.hbm [shape: f32[10,16], index: 0, kind: input, shape index: {}]
  %s1 = inlined_call_operand.hbm [shape: f32[16,128], index: 1, kind: input, shape index: {}]
  %s2 = inlined_call_operand.vmem [shape: f32[1,128], index: 2, kind: input, shape index: {}]
  %s3 = inlined_call_operand.hbm [shape: f32[128,128], index: 3, kind: input, shape index: {}]
  %s4 = inlined_call_operand.vmem [shape: f32[1,128], index: 4, kind: input, shape index: {}]
  %s5 = inlined_call_operand.hbm [shape: f32[10,128], index: 5, kind: output, shape index: {}]
  %s6 = sld [smem:[#allocation0]]
  $region42: #{decoder_forward.1} parent=0
    _
  %s8 = ssub.s32 1, %s6
  %s9 = scalar_select 0, %s8, %s6
  $region1: #{decoder_forward.1} parent=0
    #allocation2 [shape = 'u8[8192]{0}', space=vmem, size = 0x2000, scoped, tag = 'input window, operand 0, single buffered']
    #allocation3 [shape = 's32[1]{0}', space=sflag, size = 0x4, scoped, tag = 'scoped memory for decoder_forward.1']
    #allocation4 [shape = 's32[1]{0}', space=sflag, size = 0x4, scoped, tag = 'scoped memory for decoder_forward.1']
    #allocation5 [shape = 'u8[8192]{0}', space=vmem, size = 0x2000, scoped, tag = 'input window, operand 1, single buffered']
    #allocation6 [shape = 's32[1]{0}', space=sflag, size = 0x4, scoped, tag = 'scoped memory for decoder_forward.1']
    #allocation7 [shape = 'u8[65536]{0}', space=vmem, size = 0x10000, scoped, tag = 'input window, operand 3, single buffered']
    #allocation8 [shape = 'u8[8192]{0}', space=vmem, size = 0x2000, scoped, tag = 'output window, operand 0, single buffered']
    %10 = vsyncpa [#allocation3], 0
    %11 = vsyncpa [#allocation6], 0
    %12 = vsyncpa [#allocation4], 0
    // Predicated region
    $region2: #{decoder_forward.1} parent=1 // pred_check
      _
    $region3: #{decoder_forward.1} parent=1 // pred_check_branch
      %14 = sbr.rel (0) target = $region5
    $region4: #{decoder_forward.1} parent=1 // pred_region
      %s16 = ssub.s32 256, 256
      %17 = vsyncadd [#allocation3], %s16
      %s18 = sshll.u32 [#allocation2], 4
      %s19 = int_to_ptr.vmem [resolvable:$true] %s18
      %24 = dma.hbm_to_vmem [thread:$0]  %s0, 256, %s19, [#allocation3], 128, 128, 8
    $region5: #{decoder_forward.1} parent=1 // pred_fallthru
      _
    // Predicated region
    $region6: #{decoder_forward.1} parent=1 // pred_check
      _
    $region7: #{decoder_forward.1} parent=1 // pred_check_branch
      %26 = sbr.rel (0) target = $region9
    $region8: #{decoder_forward.1} parent=1 // pred_region
      %s28 = ssub.s32 256, 256
      %29 = vsyncadd [#allocation6], %s28
      %s30 = sshll.u32 [#allocation5], 4
      %s31 = int_to_ptr.vmem [resolvable:$true] %s30
      %36 = dma.hbm_to_vmem [thread:$0]  %s1, 256, %s31, [#allocation6], 128, 128, 8
    $region9: #{decoder_forward.1} parent=1 // pred_fallthru
      _
    // Predicated region
    $region10: #{decoder_forward.1} parent=1 // pred_check
      _
    $region11: #{decoder_forward.1} parent=1 // pred_check_branch
      %38 = sbr.rel (0) target = $region13
    $region12: #{decoder_forward.1} parent=1 // pred_region
      _
    $region13: #{decoder_forward.1} parent=1 // pred_fallthru
      _
    // Predicated region
    $region14: #{decoder_forward.1} parent=1 // pred_check
      _
    $region15: #{decoder_forward.1} parent=1 // pred_check_branch
      %40 = sbr.rel (0) target = $region17
    $region16: #{decoder_forward.1} parent=1 // pred_region
      %s42 = ssub.s32 2048, 2048
      %43 = vsyncadd [#allocation6], %s42
      %s44 = sshll.u32 [#allocation7], 4
      %s45 = int_to_ptr.vmem [resolvable:$true] %s44
      %50 = dma.hbm_to_vmem [thread:$0]  %s3, 2048, %s45, [#allocation6], 128, 128, 8
    $region17: #{decoder_forward.1} parent=1 // pred_fallthru
      _
    // Predicated region
    $region18: #{decoder_forward.1} parent=1 // pred_check
      _
    $region19: #{decoder_forward.1} parent=1 // pred_check_branch
      %52 = sbr.rel (0) target = $region21
    $region20: #{decoder_forward.1} parent=1 // pred_region
      _
    $region21: #{decoder_forward.1} parent=1 // pred_fallthru
      _
    // Predicated region
    $region22: #{decoder_forward.1} parent=1 // pred_check
      _
    $region23: #{decoder_forward.1} parent=1 // pred_check_branch
      %54 = sbr.rel (0) target = $region25
    $region24: #{decoder_forward.1} parent=1 // pred_region
      %55 = dma.done [#allocation3], 256
    $region25: #{decoder_forward.1} parent=1 // pred_fallthru
      _
    // Predicated region
    $region26: #{decoder_forward.1} parent=1 // pred_check
      _
    $region27: #{decoder_forward.1} parent=1 // pred_check_branch
      %57 = sbr.rel (0) target = $region29
    $region28: #{decoder_forward.1} parent=1 // pred_region
      %58 = dma.done [#allocation6], 256
    $region29: #{decoder_forward.1} parent=1 // pred_fallthru
      _
    // Predicated region
    $region30: #{decoder_forward.1} parent=1 // pred_check
      _
    $region31: #{decoder_forward.1} parent=1 // pred_check_branch
      %60 = sbr.rel (0) target = $region33
    $region32: #{decoder_forward.1} parent=1 // pred_region
      %61 = dma.done [#allocation6], 2048
    $region33: #{decoder_forward.1} parent=1 // pred_fallthru
      _
    %v62 = vld [vmem:[#allocation2] sm:$0xff]
    %v63 = vld [vmem:[#allocation2 + $0x8] sm:$0x3]
    %v64 = vld [vmem:[#allocation5] sm:$0xff]
    %v65 = vld [vmem:[#allocation5 + $0x8] sm:$0xff]
    %v66 = vld [vmem:[%s2] sm:$0x1]
    %v68 = vlaneseq
    %v69 = vshrl.u32 %v68, 7
    %v70 = vsub.s32 0, %v69
    %v71 = vrot.slane %v66, %v70
    %vm73 = vcmask 130048
    %v75 = vsel %vm73, %v62, 0
    %v78 = vsel %vm73, %v63, 0
    %80 = vmatprep.subr.mxu0 0.0
    %81 = vmatpush1.msra.mxu0 %v64
    %82 = vmatprep.subr.mxu0 0.0
    %83 = vmatpush1.msra.mxu0 %v65
    %84 = vmatprep.subr.mxu0 0.0
    %85 = vmatpush1.msra.mxu0 0.0
    %86 = vmatprep.subr.mxu0 0.0
    %87 = vmatpush1.msra.mxu0 0.0
    %88 = vmatprep.subr.mxu0 0.0
    %89 = vmatpush1.msra.mxu0 0.0
    %90 = vmatprep.subr.mxu0 0.0
    %91 = vmatpush1.msra.mxu0 0.0
    %92 = vmatprep.subr.mxu0 0.0
    %93 = vmatpush1.msra.mxu0 0.0
    %94 = vmatprep.subr.mxu0 0.0
    %95 = vmatpush1.msra.mxu0 0.0
    %96 = vmatprep.subr.mxu0 0.0
    %97 = vmatpush1.msra.mxu0 0.0
    %98 = vmatprep.subr.mxu0 0.0
    %99 = vmatpush1.msra.mxu0 0.0
    %100 = vmatprep.subr.mxu0 0.0
    %101 = vmatpush1.msra.mxu0 0.0
    %102 = vmatprep.subr.mxu0 0.0
    %103 = vmatpush1.msra.mxu0 0.0
    %104 = vmatprep.subr.mxu0 0.0
    %105 = vmatpush1.msra.mxu0 0.0
    %106 = vmatprep.subr.mxu0 0.0
    %107 = vmatpush1.msra.mxu0 0.0
    %108 = vmatprep.subr.mxu0 0.0
    %109 = vmatpush1.msra.mxu0 0.0
    %110 = vmatprep.subr.mxu0 0.0
    %111 = vmatpush1.msra.mxu0 0.0
    %112 = vmatprep.subr.mxu0 0.0
    %113 = vmatpush1.msra.mxu0 0.0
    %114 = vmatprep.subr.mxu0 0.0
    %115 = vmatpush1.msra.mxu0 0.0
    %116 = vmatprep.subr.mxu0 0.0
    %117 = vmatpush1.msra.mxu0 0.0
    %118 = vmatprep.subr.mxu0 0.0
    %119 = vmatpush1.msra.mxu0 0.0
    %120 = vmatprep.subr.mxu0 0.0
    %121 = vmatpush1.msra.mxu0 0.0
    %122 = vmatprep.subr.mxu0 0.0
    %123 = vmatpush1.msra.mxu0 0.0
    %124 = vmatprep.subr.mxu0 0.0
    %125 = vmatpush1.msra.mxu0 0.0
    %126 = vmatprep.subr.mxu0 0.0
    %127 = vmatpush1.msra.mxu0 0.0
    %128 = vmatprep.subr.mxu0 0.0
    %129 = vmatpush1.msra.mxu0 0.0
    %130 = vmatprep.subr.mxu0 0.0
    %131 = vmatpush1.msra.mxu0 0.0
    %132 = vmatprep.subr.mxu0 0.0
    %133 = vmatpush1.msra.mxu0 0.0
    %134 = vmatprep.subr.mxu0 0.0
    %135 = vmatpush1.msra.mxu0 0.0
    %136 = vmatprep.subr.mxu0 0.0
    %137 = vmatpush1.msra.mxu0 0.0
    %138 = vmatprep.subr.mxu0 0.0
    %139 = vmatpush1.msra.mxu0 0.0
    %140 = vmatprep.subr.mxu0 0.0
    %141 = vmatpush1.msra.mxu0 0.0
    %142 = vmatprep.subr.mxu0 0.0
    %143 = vmatpush1.msra.mxu0 0.0
    %144 = vmatprep.mubr.f32.mxu0 0.0
    %145 = vmatmul.mubr.f32.gmra.mrb[0].mxu0 %v75
    %v146 = vpop.f32.mrb[0].mxu0
    %v147 = vadd.f32 %v71, %v146
    %v148 = vpop.f32.mrb[0].mxu0
    %149 = vmatprep.mubr.f32.mxu0 0.0
    %150 = vmatmul.mubr.f32.gmra.mrb[0].mxu0 %v78
    %v151 = vpop.f32.mrb[0].mxu0
    %v152 = vadd.f32 %v71, %v151
    %v153 = vpop.f32.mrb[0].mxu0
    %154 = vdwg.mxu0
    %v155 = vmax.f32 %v147, 0.0
    %v156 = vmax.f32 %v152, 0.0
    %v157 = vld [vmem:[#allocation7] sm:$0xff]
    %v158 = vld [vmem:[#allocation7 + $0x8] sm:$0xff]
    %v159 = vld [vmem:[#allocation7 + $0x10] sm:$0xff]
    %v160 = vld [vmem:[#allocation7 + $0x18] sm:$0xff]
    %v161 = vld [vmem:[#allocation7 + $0x20] sm:$0xff]
    %v162 = vld [vmem:[#allocation7 + $0x28] sm:$0xff]
    %v163 = vld [vmem:[#allocation7 + $0x30] sm:$0xff]
    %v164 = vld [vmem:[#allocation7 + $0x38] sm:$0xff]
    %v165 = vld [vmem:[#allocation7 + $0x40] sm:$0xff]
    %v166 = vld [vmem:[#allocation7 + $0x48] sm:$0xff]
    %v167 = vld [vmem:[#allocation7 + $0x50] sm:$0xff]
    %v168 = vld [vmem:[#allocation7 + $0x58] sm:$0xff]
    %v169 = vld [vmem:[#allocation7 + $0x60] sm:$0xff]
    %v170 = vld [vmem:[#allocation7 + $0x68] sm:$0xff]
    %v171 = vld [vmem:[#allocation7 + $0x70] sm:$0xff]
    %v172 = vld [vmem:[#allocation7 + $0x78] sm:$0xff]
    %v173 = vld [vmem:[%s4] sm:$0x1]
    %v175 = vlaneseq
    %v176 = vshrl.u32 %v175, 7
    %v177 = vsub.s32 0, %v176
    %v178 = vrot.slane %v173, %v177
    %180 = vmatprep.subr.mxu0 0.0
    %181 = vmatpush1.msra.mxu0 %v157
    %182 = vmatprep.subr.mxu0 0.0
    %183 = vmatpush1.msra.mxu0 %v158
    %184 = vmatprep.subr.mxu0 0.0
    %185 = vmatpush1.msra.mxu0 %v159
    %186 = vmatprep.subr.mxu0 0.0
    %187 = vmatpush1.msra.mxu0 %v160
    %188 = vmatprep.subr.mxu0 0.0
    %189 = vmatpush1.msra.mxu0 %v161
    %190 = vmatprep.subr.mxu0 0.0
    %191 = vmatpush1.msra.mxu0 %v162
    %192 = vmatprep.subr.mxu0 0.0
    %193 = vmatpush1.msra.mxu0 %v163
    %194 = vmatprep.subr.mxu0 0.0
    %195 = vmatpush1.msra.mxu0 %v164
    %196 = vmatprep.subr.mxu0 0.0
    %197 = vmatpush1.msra.mxu0 %v165
    %198 = vmatprep.subr.mxu0 0.0
    %199 = vmatpush1.msra.mxu0 %v166
    %200 = vmatprep.subr.mxu0 0.0
    %201 = vmatpush1.msra.mxu0 %v167
    %202 = vmatprep.subr.mxu0 0.0
    %203 = vmatpush1.msra.mxu0 %v168
    %204 = vmatprep.subr.mxu0 0.0
    %205 = vmatpush1.msra.mxu0 %v169
    %206 = vmatprep.subr.mxu0 0.0
    %207 = vmatpush1.msra.mxu0 %v170
    %208 = vmatprep.subr.mxu0 0.0
    %209 = vmatpush1.msra.mxu0 %v171
    %210 = vmatprep.subr.mxu0 0.0
    %211 = vmatpush1.msra.mxu0 %v172
    %212 = vmatprep.subr.mxu0 0.0
    %213 = vmatpush1.msra.mxu0 0.0
    %214 = vmatprep.subr.mxu0 0.0
    %215 = vmatpush1.msra.mxu0 0.0
    %216 = vmatprep.subr.mxu0 0.0
    %217 = vmatpush1.msra.mxu0 0.0
    %218 = vmatprep.subr.mxu0 0.0
    %219 = vmatpush1.msra.mxu0 0.0
    %220 = vmatprep.subr.mxu0 0.0
    %221 = vmatpush1.msra.mxu0 0.0
    %222 = vmatprep.subr.mxu0 0.0
    %223 = vmatpush1.msra.mxu0 0.0
    %224 = vmatprep.subr.mxu0 0.0
    %225 = vmatpush1.msra.mxu0 0.0
    %226 = vmatprep.subr.mxu0 0.0
    %227 = vmatpush1.msra.mxu0 0.0
    %228 = vmatprep.subr.mxu0 0.0
    %229 = vmatpush1.msra.mxu0 0.0
    %230 = vmatprep.subr.mxu0 0.0
    %231 = vmatpush1.msra.mxu0 0.0
    %232 = vmatprep.subr.mxu0 0.0
    %233 = vmatpush1.msra.mxu0 0.0
    %234 = vmatprep.subr.mxu0 0.0
    %235 = vmatpush1.msra.mxu0 0.0
    %236 = vmatprep.subr.mxu0 0.0
    %237 = vmatpush1.msra.mxu0 0.0
    %238 = vmatprep.subr.mxu0 0.0
    %239 = vmatpush1.msra.mxu0 0.0
    %240 = vmatprep.subr.mxu0 0.0
    %241 = vmatpush1.msra.mxu0 0.0
    %242 = vmatprep.subr.mxu0 0.0
    %243 = vmatpush1.msra.mxu0 0.0
    %244 = vmatprep.mubr.f32.mxu0 0.0
    %245 = vmatmul.mubr.f32.gmra.mrb[0].mxu0 %v155
    %v246 = vpop.f32.mrb[0].mxu0
    %v247 = vadd.f32 %v178, %v246
    %v248 = vpop.f32.mrb[0].mxu0
    %249 = vmatprep.mubr.f32.mxu0 0.0
    %250 = vmatmul.mubr.f32.gmra.mrb[0].mxu0 %v156
    %v251 = vpop.f32.mrb[0].mxu0
    %v252 = vadd.f32 %v178, %v251
    %v253 = vpop.f32.mrb[0].mxu0
    %254 = vdwg.mxu0
    %v255 = vsub.f32 0.0, %v247
    %v256 = vsub.f32 0.0, %v252
    %v257 = vmul.f32 %v255, 1.442695
    %v258 = vpow.pop %v257
    %v259 = vmul.f32 %v256, 1.442695
    %v260 = vpow.pop %v259
    %v261 = vadd.f32 %v258, 1.0
    %v262 = vadd.f32 %v260, 1.0
    %v263 = vrcp.pop %v261
    %v264 = vrcp.pop %v262
    %265 = vst [vmem:[#allocation8] sm:$0xff] %v263
    %266 = vst [vmem:[#allocation8 + $0x8] sm:$0x3] %v264
    // Predicated region
    $region34: #{decoder_forward.1} parent=1 // pred_check
      _
    $region35: #{decoder_forward.1} parent=1 // pred_check_branch
      %268 = sbr.rel (0) target = $region37
    $region36: #{decoder_forward.1} parent=1 // pred_region
      %s270 = ssub.s32 256, 256
      %271 = vsyncadd [#allocation4], %s270
      %s272 = sshll.u32 [#allocation8], 4
      %s273 = int_to_ptr.vmem [resolvable:$true] %s272
      %278 = dma.vmem_to_hbm [thread:$0]  %s273, 256, %s5, [#allocation4], 128, 128, 8
    $region37: #{decoder_forward.1} parent=1 // pred_fallthru
      _
    // Predicated region
    $region38: #{decoder_forward.1} parent=1 // pred_check
      _
    $region39: #{decoder_forward.1} parent=1 // pred_check_branch
      %280 = sbr.rel (0) target = $region41
    $region40: #{decoder_forward.1} parent=1 // pred_region
      %281 = dma.done [#allocation4], 256
    $region41: #{decoder_forward.1} parent=1 // pred_fallthru
      _
    %282 = vsyncpa [#allocation3], 1
    %283 = vsyncpa [#allocation6], 1
    %284 = vsyncpa [#allocation4], 1

</llo_original>
